<compile_context>
chip_gen: v5e
topology: v5e:2x2
jax: 0.10.0
libtpu: 0.0.40
codegen_flags: <defaults>
</compile_context>

<pallas_src>
import functools

import jax
import jax.numpy as jnp
from jax.experimental import pallas as pl
from jax.experimental.pallas import tpu as pltpu

K = 3          # kernel_size (padding = K // 2 = 1)
KK = K * K


def erosion_kernel(x_ref, wb_ref, mask_ref, o_ref, *, W, L):
    """One row-block of the (N*C, H*W) layout.

    x_ref   : (R, L)  flattened spatial planes (lane-dense), batch*channel on sublanes
    wb_ref  : (R, KK) binarized 0/1 taps per row
    mask_ref: (4, L)  1/0 masks: [ok_left, ok_right, ok_top, ok_bot]
    o_ref   : (R, L)
    """
    x = x_ref[...]
    wb = wb_ref[...]
    NEG = -jnp.inf

    m_left = mask_ref[0:1, :]        # w-1 exists
    m_right = mask_ref[1:2, :]       # w+1 exists
    m_top = mask_ref[2:3, :]         # h-1 exists
    m_bot = mask_ref[3:4, :]         # h+1 exists
    ok_left = m_left > 0.5
    ok_right = m_right > 0.5
    ok_top = m_top > 0.5
    ok_bot = m_bot > 0.5

    def lshift(v, s):
        # out[:, p] = v[:, (p + s) mod L]  (caller masks the wrapped lanes).
        return pltpu.roll(v, (-s) % L, 1)

    # --- depthwise conv with binarized taps, zero padding=1, stride 1 ------------
    # dj-shifted, W-masked copies built once (fill 0 is exact for the conv).
    x_l = lshift(x, -1) * m_left     # x[.., w-1]
    x_r = lshift(x, +1) * m_right    # x[.., w+1]

    def tap(di, dj):
        k = (di + 1) * K + (dj + 1)
        return wb[:, k:k + 1]        # (R, 1) lane-splat

    def row_sum(di):                 # sum over dj for fixed di, before the row shift
        return tap(di, -1) * x_l + tap(di, 0) * x + tap(di, 1) * x_r

    conv = row_sum(0)
    conv = conv + lshift(row_sum(-1), -W) * m_top
    conv = conv + lshift(row_sum(+1), +W) * m_bot

    # --- max_pool2d(kernel_size=3, stride=1, padding=1), separable ---------------
    col = jnp.maximum(conv, jnp.where(ok_left, lshift(conv, -1), NEG))
    col = jnp.maximum(col, jnp.where(ok_right, lshift(conv, +1), NEG))
    out = jnp.maximum(col, jnp.where(ok_top, lshift(col, -W), NEG))
    out = jnp.maximum(out, jnp.where(ok_bot, lshift(col, +W), NEG))

    o_ref[...] = out.astype(o_ref.dtype)


def erosion_layer(x, weight):
    """x: (N, C, H, W); weight: (C, 1, K, K) raw depthwise conv weight.

    Matches ErosionLayer.forward: conv2d(x, MaxBinarize(weight), groups=C, padding=1)
    followed by max_pool2d(kernel_size=3, stride=1, padding=1).  (The Conv2d bias is
    never used by the PyTorch forward, so none is applied.)
    """
    N, C, H, W = x.shape
    assert weight.shape == (C, 1, K, K)
    L = H * W
    rows = N * C

    # MaxBinarize hoisted to the wrapper: tap == per-channel max -> 1.0, else 0.0.
    wf = weight.reshape(C, KK).astype(jnp.float32)
    wb = (wf == wf.max(axis=1, keepdims=True)).astype(x.dtype)      # (C, KK)
    wb_rows = jnp.tile(wb, (N, 1))                                  # (N*C, KK)

    x_rows = x.reshape(rows, L)                                     # free reshape (NCHW)

    # Precomputed lane-dense boundary masks (no in-kernel iota / modulo).
    lane = jnp.arange(L, dtype=jnp.int32)
    w_idx = lane % W
    masks = jnp.stack([
        w_idx >= 1,          # ok_left
        w_idx <= W - 2,      # ok_right
        lane >= W,           # ok_top
        lane < L - W,        # ok_bot
    ]).astype(x.dtype)                                              # (4, L)

    # Row-block the sublane axis (multiple of 8); pad rows if needed.
    R_blk = min(rows, 256)
    R_blk = -(-R_blk // 8) * 8
    n_blocks = -(-rows // R_blk)
    rows_p = n_blocks * R_blk
    if rows_p != rows:
        pad = rows_p - rows
        x_rows = jnp.pad(x_rows, ((0, pad), (0, 0)))
        wb_rows = jnp.pad(wb_rows, ((0, pad), (0, 0)))

    blk_bytes = R_blk * L * x.dtype.itemsize
    vmem_limit = int(min(48 * 1024 * 1024,
                         max(32 * 1024 * 1024, 6 * blk_bytes)))

    kernel = functools.partial(erosion_kernel, W=W, L=L)
    out = pl.pallas_call(
        kernel,
        out_shape=jax.ShapeDtypeStruct((rows_p, L), x.dtype),
        grid_spec=pltpu.PrefetchScalarGridSpec(
            num_scalar_prefetch=0,
            grid=(n_blocks,),
            in_specs=[
                pl.BlockSpec((R_blk, L), lambda r: (r, 0)),
                pl.BlockSpec((R_blk, KK), lambda r: (r, 0)),
                pl.BlockSpec((4, L), lambda r: (0, 0)),
            ],
            out_specs=pl.BlockSpec((R_blk, L), lambda r: (r, 0)),
        ),
        compiler_params=pltpu.CompilerParams(
            dimension_semantics=("parallel",),
            vmem_limit_bytes=vmem_limit,
        ),
    )(x_rows, wb_rows, masks)
    return out[:rows].reshape(N, C, H, W)


def erosion_ref(x, weight):
    """Pure-JAX reference (mirrors the PyTorch forward) for correctness checking."""
    N, C, H, W = x.shape
    wf = weight.reshape(C, -1)
    mx = wf.max(axis=1, keepdims=True)
    wb = (wf == mx).astype(jnp.float32).reshape(C, K, K)

    xp = jnp.pad(x, ((0, 0), (0, 0), (1, 1), (1, 1)))
    conv = jnp.zeros_like(x)
    for i in range(K):
        for j in range(K):
            conv = conv + wb[:, i, j][None, :, None, None] * xp[:, :, i:i + H, j:j + W]

    cp = jnp.pad(conv, ((0, 0), (0, 0), (1, 1), (1, 1)), constant_values=-jnp.inf)
    pooled = jnp.full_like(conv, -jnp.inf)
    for i in range(K):
        for j in range(K):
            pooled = jnp.maximum(pooled, cp[:, :, i:i + H, j:j + W])
    return pooled


if __name__ == "__main__":
    key = jax.random.PRNGKey(0)
    kx, kw = jax.random.split(key)

    N, C, H, W = 2, 4, 16, 16
    x = jax.random.normal(kx, (N, C, H, W), dtype=jnp.float32)
    weight = jax.random.normal(kw, (C, 1, K, K), dtype=jnp.float32)

    out = erosion_layer(x, weight)
    out = jax.block_until_ready(out)

    ref = erosion_ref(x, weight)
    assert out.shape == (N, C, H, W)
    assert jnp.allclose(out, ref, atol=1e-5, rtol=1e-5), "mismatch vs reference"

    print("KERNEL_OK")
</pallas_src>

<mosaic_0001>
module attributes {stable_mosaic.version = 11 : i64} {
  func.func @erosion_kernel(%arg0: i32, %arg1: memref<8x256xf32, #tpu.memory_space<vmem>>, %arg2: memref<8x9xf32, #tpu.memory_space<vmem>>, %arg3: memref<4x256xf32, #tpu.memory_space<vmem>>, %arg4: memref<8x256xf32, #tpu.memory_space<vmem>>) attributes {dimension_semantics = [#tpu.dimension_semantics<parallel>], iteration_bounds = array<i64: 1>, scalar_prefetch = 0 : i64, scratch_operands = 0 : i64, tpu.core_type = #tpu.core_type<tc>, window_params = [{transform_indices = @transform_0, window_bounds = array<i64: 8, 256>}, {transform_indices = @transform_1, window_bounds = array<i64: 8, 9>}, {pipeline_mode = #tpu.pipeline_mode<synchronous>, transform_indices = @transform_2, window_bounds = array<i64: 4, 256>}, {transform_indices = @transform_3, window_bounds = array<i64: 8, 256>}]} {
    %c0 = arith.constant 0 : index
    %c0_0 = arith.constant 0 : index
    %0 = vector.load %arg1[%c0, %c0_0] : memref<8x256xf32, #tpu.memory_space<vmem>>, vector<8x256xf32>
    %c0_1 = arith.constant 0 : index
    %c0_2 = arith.constant 0 : index
    %1 = vector.load %arg2[%c0_1, %c0_2] : memref<8x9xf32, #tpu.memory_space<vmem>>, vector<8x9xf32>
    %c0_3 = arith.constant 0 : index
    %c0_4 = arith.constant 0 : index
    %2 = vector.load %arg3[%c0_3, %c0_4] : memref<4x256xf32, #tpu.memory_space<vmem>>, vector<1x256xf32>
    %c1 = arith.constant 1 : index
    %c0_5 = arith.constant 0 : index
    %3 = vector.load %arg3[%c1, %c0_5] : memref<4x256xf32, #tpu.memory_space<vmem>>, vector<1x256xf32>
    %c2 = arith.constant 2 : index
    %c0_6 = arith.constant 0 : index
    %4 = vector.load %arg3[%c2, %c0_6] : memref<4x256xf32, #tpu.memory_space<vmem>>, vector<1x256xf32>
    %c3 = arith.constant 3 : index
    %c0_7 = arith.constant 0 : index
    %5 = vector.load %arg3[%c3, %c0_7] : memref<4x256xf32, #tpu.memory_space<vmem>>, vector<1x256xf32>
    %cst = arith.constant 5.000000e-01 : f32
    %6 = vector.broadcast %cst : f32 to vector<1x256xf32>
    %7 = arith.cmpf ogt, %2, %6 : vector<1x256xf32>
    %cst_8 = arith.constant 5.000000e-01 : f32
    %8 = vector.broadcast %cst_8 : f32 to vector<1x256xf32>
    %9 = arith.cmpf ogt, %3, %8 : vector<1x256xf32>
    %cst_9 = arith.constant 5.000000e-01 : f32
    %10 = vector.broadcast %cst_9 : f32 to vector<1x256xf32>
    %11 = arith.cmpf ogt, %4, %10 : vector<1x256xf32>
    %cst_10 = arith.constant 5.000000e-01 : f32
    %12 = vector.broadcast %cst_10 : f32 to vector<1x256xf32>
    %13 = arith.cmpf ogt, %5, %12 : vector<1x256xf32>
    %c1_i32 = arith.constant 1 : i32
    %14 = tpu.dynamic_rotate %0 by %c1_i32 dim 1 : vector<8x256xf32>, i32 -> vector<8x256xf32>
    %15 = vector.broadcast %2 : vector<1x256xf32> to vector<8x256xf32>
    %16 = arith.mulf %14, %15 : vector<8x256xf32>
    %c255_i32 = arith.constant 255 : i32
    %17 = tpu.dynamic_rotate %0 by %c255_i32 dim 1 : vector<8x256xf32>, i32 -> vector<8x256xf32>
    %18 = vector.broadcast %3 : vector<1x256xf32> to vector<8x256xf32>
    %19 = arith.mulf %17, %18 : vector<8x256xf32>
    %20 = vector.extract_strided_slice %1 {offsets = [0, 3], sizes = [8, 1], strides = [1, 1]} : vector<8x9xf32> to vector<8x1xf32>
    %21 = vector.broadcast %20 : vector<8x1xf32> to vector<8x256xf32>
    %22 = arith.mulf %21, %16 : vector<8x256xf32>
    %23 = vector.extract_strided_slice %1 {offsets = [0, 4], sizes = [8, 1], strides = [1, 1]} : vector<8x9xf32> to vector<8x1xf32>
    %24 = vector.broadcast %23 : vector<8x1xf32> to vector<8x256xf32>
    %25 = arith.mulf %24, %0 : vector<8x256xf32>
    %26 = arith.addf %22, %25 : vector<8x256xf32>
    %27 = vector.extract_strided_slice %1 {offsets = [0, 5], sizes = [8, 1], strides = [1, 1]} : vector<8x9xf32> to vector<8x1xf32>
    %28 = vector.broadcast %27 : vector<8x1xf32> to vector<8x256xf32>
    %29 = arith.mulf %28, %19 : vector<8x256xf32>
    %30 = arith.addf %26, %29 : vector<8x256xf32>
    %31 = vector.extract_strided_slice %1 {offsets = [0, 0], sizes = [8, 1], strides = [1, 1]} : vector<8x9xf32> to vector<8x1xf32>
    %32 = vector.broadcast %31 : vector<8x1xf32> to vector<8x256xf32>
    %33 = arith.mulf %32, %16 : vector<8x256xf32>
    %34 = vector.extract_strided_slice %1 {offsets = [0, 1], sizes = [8, 1], strides = [1, 1]} : vector<8x9xf32> to vector<8x1xf32>
    %35 = vector.broadcast %34 : vector<8x1xf32> to vector<8x256xf32>
    %36 = arith.mulf %35, %0 : vector<8x256xf32>
    %37 = arith.addf %33, %36 : vector<8x256xf32>
    %38 = vector.extract_strided_slice %1 {offsets = [0, 2], sizes = [8, 1], strides = [1, 1]} : vector<8x9xf32> to vector<8x1xf32>
    %39 = vector.broadcast %38 : vector<8x1xf32> to vector<8x256xf32>
    %40 = arith.mulf %39, %19 : vector<8x256xf32>
    %41 = arith.addf %37, %40 : vector<8x256xf32>
    %c16_i32 = arith.constant 16 : i32
    %42 = tpu.dynamic_rotate %41 by %c16_i32 dim 1 : vector<8x256xf32>, i32 -> vector<8x256xf32>
    %43 = vector.broadcast %4 : vector<1x256xf32> to vector<8x256xf32>
    %44 = arith.mulf %42, %43 : vector<8x256xf32>
    %45 = arith.addf %30, %44 : vector<8x256xf32>
    %46 = vector.extract_strided_slice %1 {offsets = [0, 6], sizes = [8, 1], strides = [1, 1]} : vector<8x9xf32> to vector<8x1xf32>
    %47 = vector.broadcast %46 : vector<8x1xf32> to vector<8x256xf32>
    %48 = arith.mulf %47, %16 : vector<8x256xf32>
    %49 = vector.extract_strided_slice %1 {offsets = [0, 7], sizes = [8, 1], strides = [1, 1]} : vector<8x9xf32> to vector<8x1xf32>
    %50 = vector.broadcast %49 : vector<8x1xf32> to vector<8x256xf32>
    %51 = arith.mulf %50, %0 : vector<8x256xf32>
    %52 = arith.addf %48, %51 : vector<8x256xf32>
    %53 = vector.extract_strided_slice %1 {offsets = [0, 8], sizes = [8, 1], strides = [1, 1]} : vector<8x9xf32> to vector<8x1xf32>
    %54 = vector.broadcast %53 : vector<8x1xf32> to vector<8x256xf32>
    %55 = arith.mulf %54, %19 : vector<8x256xf32>
    %56 = arith.addf %52, %55 : vector<8x256xf32>
    %c240_i32 = arith.constant 240 : i32
    %57 = tpu.dynamic_rotate %56 by %c240_i32 dim 1 : vector<8x256xf32>, i32 -> vector<8x256xf32>
    %58 = vector.broadcast %5 : vector<1x256xf32> to vector<8x256xf32>
    %59 = arith.mulf %57, %58 : vector<8x256xf32>
    %60 = arith.addf %45, %59 : vector<8x256xf32>
    %c1_i32_11 = arith.constant 1 : i32
    %61 = tpu.dynamic_rotate %60 by %c1_i32_11 dim 1 : vector<8x256xf32>, i32 -> vector<8x256xf32>
    %cst_12 = arith.constant 0xFF800000 : f32
    %62 = vector.shape_cast %7 : vector<1x256xi1> to vector<1x256xi1>
    %63 = vector.broadcast %62 : vector<1x256xi1> to vector<8x256xi1>
    %64 = vector.broadcast %cst_12 : f32 to vector<8x256xf32>
    %65 = arith.select %63, %61, %64 : vector<8x256xi1>, vector<8x256xf32>
    %66 = arith.maximumf %60, %65 : vector<8x256xf32>
    %c255_i32_13 = arith.constant 255 : i32
    %67 = tpu.dynamic_rotate %60 by %c255_i32_13 dim 1 : vector<8x256xf32>, i32 -> vector<8x256xf32>
    %cst_14 = arith.constant 0xFF800000 : f32
    %68 = vector.shape_cast %9 : vector<1x256xi1> to vector<1x256xi1>
    %69 = vector.broadcast %68 : vector<1x256xi1> to vector<8x256xi1>
    %70 = vector.broadcast %cst_14 : f32 to vector<8x256xf32>
    %71 = arith.select %69, %67, %70 : vector<8x256xi1>, vector<8x256xf32>
    %72 = arith.maximumf %66, %71 : vector<8x256xf32>
    %c16_i32_15 = arith.constant 16 : i32
    %73 = tpu.dynamic_rotate %72 by %c16_i32_15 dim 1 : vector<8x256xf32>, i32 -> vector<8x256xf32>
    %cst_16 = arith.constant 0xFF800000 : f32
    %74 = vector.shape_cast %11 : vector<1x256xi1> to vector<1x256xi1>
    %75 = vector.broadcast %74 : vector<1x256xi1> to vector<8x256xi1>
    %76 = vector.broadcast %cst_16 : f32 to vector<8x256xf32>
    %77 = arith.select %75, %73, %76 : vector<8x256xi1>, vector<8x256xf32>
    %78 = arith.maximumf %72, %77 : vector<8x256xf32>
    %c240_i32_17 = arith.constant 240 : i32
    %79 = tpu.dynamic_rotate %72 by %c240_i32_17 dim 1 : vector<8x256xf32>, i32 -> vector<8x256xf32>
    %cst_18 = arith.constant 0xFF800000 : f32
    %80 = vector.shape_cast %13 : vector<1x256xi1> to vector<1x256xi1>
    %81 = vector.broadcast %80 : vector<1x256xi1> to vector<8x256xi1>
    %82 = vector.broadcast %cst_18 : f32 to vector<8x256xf32>
    %83 = arith.select %81, %79, %82 : vector<8x256xi1>, vector<8x256xf32>
    %84 = arith.maximumf %78, %83 : vector<8x256xf32>
    %c0_19 = arith.constant 0 : index
    %c0_20 = arith.constant 0 : index
    %85 = vector.load %arg4[%c0_19, %c0_20] : memref<8x256xf32, #tpu.memory_space<vmem>>, vector<8x256xf32>
    tpu.vector_store %arg4[%c0_19, %c0_20], %84 {strides = array<i32>} : memref<8x256xf32, #tpu.memory_space<vmem>>, vector<8x256xf32>,
    return
  }
  func.func @transform_0(%arg0: i32) -> (i32, i32) {
    %c0_i32 = arith.constant 0 : i32
    %c0_i32_0 = arith.constant 0 : i32
    return %arg0, %c0_i32 : i32, i32
  }
  func.func @transform_1(%arg0: i32) -> (i32, i32) {
    %c0_i32 = arith.constant 0 : i32
    %c0_i32_0 = arith.constant 0 : i32
    return %arg0, %c0_i32 : i32, i32
  }
  func.func @transform_2(%arg0: i32) -> (i32, i32) {
    %c0_i32 = arith.constant 0 : i32
    %c0_i32_0 = arith.constant 0 : i32
    %c0_i32_1 = arith.constant 0 : i32
    return %c0_i32, %c0_i32_0 : i32, i32
  }
  func.func @transform_3(%arg0: i32) -> (i32, i32) {
    %c0_i32 = arith.constant 0 : i32
    %c0_i32_0 = arith.constant 0 : i32
    return %arg0, %c0_i32 : i32, i32
  }
}

</mosaic_0001>

<llo_original>
// kernel: tpu_custom_call.1
$region0: #{tpu_custom_call.1}
  #allocation0 [shape = 'u32[]', space=smem, size = 0x4, offset = 0x4, fixed_abs, tag = 'smem constant byte address 0x4 - core index']
  #allocation1 [shape = 'u32[72,128]{1,0:T(1,128)}', space=vmem, size = 0x9000, scoped, tag = 'internal scratch']
  %s0 = inlined_call_operand.hbm [shape: f32[8,256], index: 0, kind: input, shape index: {}]
  %s1 = inlined_call_operand.hbm [shape: f32[8,9], index: 1, kind: input, shape index: {}]
  %s2 = inlined_call_operand.hbm [shape: f32[4,256], index: 2, kind: input, shape index: {}]
  %s3 = inlined_call_operand.hbm [shape: f32[8,256], index: 3, kind: output, shape index: {}]
  %s4 = sld [smem:[#allocation0]]
  $region34: #{tpu_custom_call.1} parent=0
    _
  %s6 = ssub.s32 1, %s4
  %s7 = scalar_select 0, %s6, %s4
  $region1: #{tpu_custom_call.1} parent=0
    #allocation2 [shape = 'u8[8192]{0}', space=vmem, size = 0x2000, scoped, tag = 'input window, operand 0, single buffered']
    #allocation3 [shape = 's32[1]{0}', space=sflag, size = 0x4, scoped, tag = 'scoped memory for tpu_custom_call.1']
    #allocation4 [shape = 's32[1]{0}', space=sflag, size = 0x4, scoped, tag = 'scoped memory for tpu_custom_call.1']
    #allocation5 [shape = 'u8[4096]{0}', space=vmem, size = 0x1000, scoped, tag = 'input window, operand 1, single buffered']
    #allocation6 [shape = 's32[1]{0}', space=sflag, size = 0x4, scoped, tag = 'scoped memory for tpu_custom_call.1']
    #allocation7 [shape = 'u8[4096]{0}', space=vmem, size = 0x1000, scoped, tag = 'input window, operand 2, single buffered']
    #allocation8 [shape = 'u8[8192]{0}', space=vmem, size = 0x2000, scoped, tag = 'output window, operand 0, single buffered']
    %8 = vsyncpa [#allocation3], 0
    %9 = vsyncpa [#allocation6], 0
    %10 = vsyncpa [#allocation4], 0
    // Predicated region
    $region2: #{tpu_custom_call.1} parent=1 // pred_check
      _
    $region3: #{tpu_custom_call.1} parent=1 // pred_check_branch
      %12 = sbr.rel (0) target = $region5
    $region4: #{tpu_custom_call.1} parent=1 // pred_region
      %14 = vsyncadd [#allocation3], 0
      %s16 = sshll.u32 %s0, 4
      %s17 = int_to_ptr.hbm [resolvable:$true] %s16
      %s18 = sshll.u32 [#allocation2], 4
      %s19 = int_to_ptr.vmem [resolvable:$true] %s18
      %21 = dma.hbm_to_vmem [thread:$0]  %s17, 256, %s19, [#allocation3]
    $region5: #{tpu_custom_call.1} parent=1 // pred_fallthru
      _
    // Predicated region
    $region6: #{tpu_custom_call.1} parent=1 // pred_check
      _
    $region7: #{tpu_custom_call.1} parent=1 // pred_check_branch
      %23 = sbr.rel (0) target = $region9
    $region8: #{tpu_custom_call.1} parent=1 // pred_region
      %25 = vsyncadd [#allocation6], 0
      %s27 = sshll.u32 %s1, 4
      %s28 = int_to_ptr.hbm [resolvable:$true] %s27
      %s29 = sshll.u32 [#allocation5], 4
      %s30 = int_to_ptr.vmem [resolvable:$true] %s29
      %32 = dma.hbm_to_vmem [thread:$0]  %s28, 128, %s30, [#allocation6]
    $region9: #{tpu_custom_call.1} parent=1 // pred_fallthru
      _
    // Predicated region
    $region10: #{tpu_custom_call.1} parent=1 // pred_check
      _
    $region11: #{tpu_custom_call.1} parent=1 // pred_check_branch
      %34 = sbr.rel (0) target = $region13
    $region12: #{tpu_custom_call.1} parent=1 // pred_region
      %36 = vsyncadd [#allocation6], 0
      %s38 = sshll.u32 %s2, 4
      %s39 = int_to_ptr.hbm [resolvable:$true] %s38
      %s40 = sshll.u32 [#allocation7], 4
      %s41 = int_to_ptr.vmem [resolvable:$true] %s40
      %43 = dma.hbm_to_vmem [thread:$0]  %s39, 128, %s41, [#allocation6]
    $region13: #{tpu_custom_call.1} parent=1 // pred_fallthru
      _
    // Predicated region
    $region14: #{tpu_custom_call.1} parent=1 // pred_check
      _
    $region15: #{tpu_custom_call.1} parent=1 // pred_check_branch
      %45 = sbr.rel (0) target = $region17
    $region16: #{tpu_custom_call.1} parent=1 // pred_region
      %47 = dma.done [#allocation3], 256
    $region17: #{tpu_custom_call.1} parent=1 // pred_fallthru
      _
    // Predicated region
    $region18: #{tpu_custom_call.1} parent=1 // pred_check
      _
    $region19: #{tpu_custom_call.1} parent=1 // pred_check_branch
      %49 = sbr.rel (0) target = $region21
    $region20: #{tpu_custom_call.1} parent=1 // pred_region
      %51 = dma.done [#allocation6], 128
    $region21: #{tpu_custom_call.1} parent=1 // pred_fallthru
      _
    // Predicated region
    $region22: #{tpu_custom_call.1} parent=1 // pred_check
      _
    $region23: #{tpu_custom_call.1} parent=1 // pred_check_branch
      %53 = sbr.rel (0) target = $region25
    $region24: #{tpu_custom_call.1} parent=1 // pred_region
      %55 = dma.done [#allocation6], 128
    $region25: #{tpu_custom_call.1} parent=1 // pred_fallthru
      _
    %v56 = vld [vmem:[#allocation2] sm:$0xff]
    %v57 = vld [vmem:[#allocation2 + $0x8] sm:$0xff]
    %v58 = vld [vmem:[#allocation5] sm:$0xff]
    %v59 = vld [vmem:[#allocation7] ss:$4 sm:$0x3]
    %s60 = scalar_lea.vmem [#allocation7], 1
    %v61 = vld [vmem:[%s60] ss:$4 sm:$0x3]
    %s62 = scalar_lea.vmem [#allocation7], 2
    %v63 = vld [vmem:[%s62] ss:$4 sm:$0x3]
    %s64 = scalar_lea.vmem [#allocation7], 3
    %v65 = vld [vmem:[%s64] ss:$4 sm:$0x3]
    %vm66 = vcmp.gt.f32.partialorder %v59, 0.5
    %vm67 = vcmp.gt.f32.partialorder %v61, 0.5
    %vm68 = vcmp.gt.f32.partialorder %v63, 0.5
    %vm69 = vcmp.gt.f32.partialorder %v65, 0.5
    %70 = vrot.lane.b32.xlu0 %v56, 1
    %v71 = vpop.permute.xlu0 %70
    %72 = vrot.lane.b32.xlu0 %v57, 1
    %v73 = vpop.permute.xlu0 %72
    %v74 = vlaneseq
    %v75 = vand.u32 %v74, 127
    %vm76 = vcmp.lt.s32.totalorder %v75, 1
    %v77 = vsel %vm76, %v71, %v73
    %v78 = vsel %vm76, %v73, %v71
    %v80 = vperm.slane %v59, 0
    %v81 = vperm.slane %v59, 1
    %v84 = vmul.f32 %v78, %v80
    %v85 = vmul.f32 %v77, %v81
    %86 = vrot.lane.b32.xlu0 %v56, 127
    %v87 = vpop.permute.xlu0 %86
    %88 = vrot.lane.b32.xlu0 %v57, 127
    %v89 = vpop.permute.xlu0 %88
    %vm90 = vcmp.lt.s32.totalorder %v75, 127
    %v91 = vsel %vm90, %v87, %v89
    %v92 = vsel %vm90, %v89, %v87
    %v94 = vperm.slane %v61, 0
    %v95 = vperm.slane %v61, 1
    %v98 = vmul.f32 %v91, %v94
    %v99 = vmul.f32 %v92, %v95
    %101 = vset.pattern.permute.xlu0 3
    %102 = vperm.xlu0 %101, %v58
    %v103 = vpop.permute.xlu0 %102
    %v105 = vmul.f32 %v103, %v84
    %v106 = vmul.f32 %v103, %v85
    %107 = vset.pattern.permute.xlu0 4
    %108 = vperm.xlu0 %107, %v58
    %v109 = vpop.permute.xlu0 %108
    %v111 = vmul.f32 %v109, %v56
    %v112 = vmul.f32 %v109, %v57
    %v113 = vadd.f32 %v105, %v111
    %v114 = vadd.f32 %v106, %v112
    %115 = vset.pattern.permute.xlu0 5
    %116 = vperm.xlu0 %115, %v58
    %v117 = vpop.permute.xlu0 %116
    %v119 = vmul.f32 %v117, %v98
    %v120 = vmul.f32 %v117, %v99
    %v121 = vadd.f32 %v113, %v119
    %v122 = vadd.f32 %v114, %v120
    %123 = vset.pattern.permute.xlu0 0
    %124 = vperm.xlu0 %123, %v58
    %v125 = vpop.permute.xlu0 %124
    %v127 = vmul.f32 %v125, %v84
    %v128 = vmul.f32 %v125, %v85
    %129 = vset.pattern.permute.xlu0 1
    %130 = vperm.xlu0 %129, %v58
    %v131 = vpop.permute.xlu0 %130
    %v133 = vmul.f32 %v131, %v56
    %v134 = vmul.f32 %v131, %v57
    %v135 = vadd.f32 %v127, %v133
    %v136 = vadd.f32 %v128, %v134
    %137 = vset.pattern.permute.xlu0 2
    %138 = vperm.xlu0 %137, %v58
    %v139 = vpop.permute.xlu0 %138
    %v141 = vmul.f32 %v139, %v98
    %v142 = vmul.f32 %v139, %v99
    %v143 = vadd.f32 %v135, %v141
    %v144 = vadd.f32 %v136, %v142
    %145 = vrot.lane.b32.xlu0 %v143, 16
    %v146 = vpop.permute.xlu0 %145
    %147 = vrot.lane.b32.xlu0 %v144, 16
    %v148 = vpop.permute.xlu0 %147
    %vm149 = vcmp.lt.s32.totalorder %v75, 16
    %v150 = vsel %vm149, %v146, %v148
    %v151 = vsel %vm149, %v148, %v146
    %v153 = vperm.slane %v63, 0
    %v154 = vperm.slane %v63, 1
    %v157 = vmul.f32 %v151, %v153
    %v158 = vmul.f32 %v150, %v154
    %v159 = vadd.f32 %v121, %v157
    %v160 = vadd.f32 %v122, %v158
    %161 = vset.pattern.permute.xlu0 6
    %162 = vperm.xlu0 %161, %v58
    %v163 = vpop.permute.xlu0 %162
    %v165 = vmul.f32 %v163, %v84
    %v166 = vmul.f32 %v163, %v85
    %167 = vset.pattern.permute.xlu0 7
    %168 = vperm.xlu0 %167, %v58
    %v169 = vpop.permute.xlu0 %168
    %v171 = vmul.f32 %v169, %v56
    %v172 = vmul.f32 %v169, %v57
    %v173 = vadd.f32 %v165, %v171
    %v174 = vadd.f32 %v166, %v172
    %175 = vset.pattern.permute.xlu0 8
    %176 = vperm.xlu0 %175, %v58
    %v177 = vpop.permute.xlu0 %176
    %v179 = vmul.f32 %v177, %v98
    %v180 = vmul.f32 %v177, %v99
    %v181 = vadd.f32 %v173, %v179
    %v182 = vadd.f32 %v174, %v180
    %183 = vrot.lane.b32.xlu0 %v181, 112
    %v184 = vpop.permute.xlu0 %183
    %185 = vrot.lane.b32.xlu0 %v182, 112
    %v186 = vpop.permute.xlu0 %185
    %vm187 = vcmp.lt.s32.totalorder %v75, 112
    %v188 = vsel %vm187, %v184, %v186
    %v189 = vsel %vm187, %v186, %v184
    %v191 = vperm.slane %v65, 0
    %v192 = vperm.slane %v65, 1
    %v195 = vmul.f32 %v188, %v191
    %v196 = vmul.f32 %v189, %v192
    %v197 = vadd.f32 %v159, %v195
    %v198 = vadd.f32 %v160, %v196
    %199 = vrot.lane.b32.xlu0 %v197, 1
    %v200 = vpop.permute.xlu0 %199
    %201 = vrot.lane.b32.xlu0 %v198, 1
    %v202 = vpop.permute.xlu0 %201
    %v203 = vsel %vm76, %v200, %v202
    %v204 = vsel %vm76, %v202, %v200
    %v205 = vsel %vm66, 1, 0
    %v206 = vperm.slane %v205, 0
    %v207 = vperm.slane %v205, 1
    %vm208 = vcmp.eq.s32.totalorder %v206, 1
    %vm209 = vcmp.eq.s32.totalorder %v207, 1
    %v210 = vsel %vm208, %v204, -inf
    %v211 = vsel %vm209, %v203, -inf
    %v212 = vmax.f32 %v197, %v210
    %v213 = vmax.f32 %v198, %v211
    %214 = vrot.lane.b32.xlu0 %v197, 127
    %v215 = vpop.permute.xlu0 %214
    %216 = vrot.lane.b32.xlu0 %v198, 127
    %v217 = vpop.permute.xlu0 %216
    %v218 = vsel %vm90, %v215, %v217
    %v219 = vsel %vm90, %v217, %v215
    %v220 = vsel %vm67, 1, 0
    %v221 = vperm.slane %v220, 0
    %v222 = vperm.slane %v220, 1
    %vm223 = vcmp.eq.s32.totalorder %v221, 1
    %vm224 = vcmp.eq.s32.totalorder %v222, 1
    %v225 = vsel %vm223, %v218, -inf
    %v226 = vsel %vm224, %v219, -inf
    %v227 = vmax.f32 %v212, %v225
    %v228 = vmax.f32 %v213, %v226
    %229 = vrot.lane.b32.xlu0 %v227, 16
    %v230 = vpop.permute.xlu0 %229
    %231 = vrot.lane.b32.xlu0 %v228, 16
    %v232 = vpop.permute.xlu0 %231
    %v233 = vsel %vm149, %v230, %v232
    %v234 = vsel %vm149, %v232, %v230
    %v235 = vsel %vm68, 1, 0
    %v236 = vperm.slane %v235, 0
    %v237 = vperm.slane %v235, 1
    %vm238 = vcmp.eq.s32.totalorder %v236, 1
    %vm239 = vcmp.eq.s32.totalorder %v237, 1
    %v240 = vsel %vm238, %v234, -inf
    %v241 = vsel %vm239, %v233, -inf
    %v242 = vmax.f32 %v227, %v240
    %v243 = vmax.f32 %v228, %v241
    %244 = vrot.lane.b32.xlu0 %v227, 112
    %v245 = vpop.permute.xlu0 %244
    %246 = vrot.lane.b32.xlu0 %v228, 112
    %v247 = vpop.permute.xlu0 %246
    %v248 = vsel %vm187, %v245, %v247
    %v249 = vsel %vm187, %v247, %v245
    %v250 = vsel %vm69, 1, 0
    %v251 = vperm.slane %v250, 0
    %v252 = vperm.slane %v250, 1
    %vm253 = vcmp.eq.s32.totalorder %v251, 1
    %vm254 = vcmp.eq.s32.totalorder %v252, 1
    %v255 = vsel %vm253, %v248, -inf
    %v256 = vsel %vm254, %v249, -inf
    %v257 = vmax.f32 %v242, %v255
    %v258 = vmax.f32 %v243, %v256
    %259 = vst [vmem:[#allocation8] sm:$0xff] %v257
    %260 = vst [vmem:[#allocation8 + $0x8] sm:$0xff] %v258
    // Predicated region
    $region26: #{tpu_custom_call.1} parent=1 // pred_check
      _
    $region27: #{tpu_custom_call.1} parent=1 // pred_check_branch
      %262 = sbr.rel (0) target = $region29
    $region28: #{tpu_custom_call.1} parent=1 // pred_region
      %264 = vsyncadd [#allocation4], 0
      %s266 = sshll.u32 [#allocation8], 4
      %s267 = int_to_ptr.vmem [resolvable:$true] %s266
      %s268 = sshll.u32 %s3, 4
      %s269 = int_to_ptr.hbm [resolvable:$true] %s268
      %271 = dma.vmem_to_hbm [thread:$0]  %s267, 256, %s269, [#allocation4]
    $region29: #{tpu_custom_call.1} parent=1 // pred_fallthru
      _
    // Predicated region
    $region30: #{tpu_custom_call.1} parent=1 // pred_check
      _
    $region31: #{tpu_custom_call.1} parent=1 // pred_check_branch
      %273 = sbr.rel (0) target = $region33
    $region32: #{tpu_custom_call.1} parent=1 // pred_region
      %275 = dma.done [#allocation4], 256
    $region33: #{tpu_custom_call.1} parent=1 // pred_fallthru
      _
    %276 = vsyncpa [#allocation3], 1
    %277 = vsyncpa [#allocation6], 1
    %278 = vsyncpa [#allocation4], 1

</llo_original>
